<compile_context>
chip_gen: v6e
topology: v6e:2x2x1
jax: 0.10.0
libtpu: 0.0.40
codegen_flags: <defaults>
</compile_context>

<pallas_src>
import functools

import jax
import jax.numpy as jnp
from jax.experimental import pallas as pl
from jax.experimental.pallas import tpu as pltpu


def _net_kernel(x_ref, w1_ref, b1_ref, w2_ref, b2_ref, o_ref):
    # ---- Layer 1: sigmoid(x @ W1 + b1) ------------------------------------
    xb = x_ref[...].astype(jnp.bfloat16)                                # (TB, 78)
    h = jnp.dot(xb, w1_ref[...], preferred_element_type=jnp.float32)    # (TB, 50)
    h = jax.nn.sigmoid(h + b1_ref[...])                                 # b1: (1, 50)

    # ---- Layer 2 + softmax, folded into a sigmoid --------------------------
    # W2'/b2' are the +/- folded weights (done once in the wrapper), so
    # sigmoid(z') is the exact softmax probability.
    z = jnp.dot(h, w2_ref[...], preferred_element_type=jnp.float32)     # (TB, 2)
    # Transpose the small logits tile so the epilogue + store are lane-dense.
    zt = z.T                                                            # (2, TB)
    o_ref[...] = jax.nn.sigmoid(zt + b2_ref[...])                       # b2': (2, 1)


def _round_up(n, m):
    return ((n + m - 1) // m) * m


@functools.partial(jax.jit, static_argnames=("tile_b",))
def net_forward(x, w1, b1, w2, b2, *, tile_b=8192):
    """x: (B, 78) f32.  Returns softmax probabilities (B, 2) f32.

    Weights are stored pre-transposed relative to PyTorch: w1 (78, 50),
    b1 (1, 50), w2 (50, 2), b2 (1, 2), so the kernel does plain x @ W.
    """
    B, f_in = x.shape
    hid = w1.shape[1]
    n_cls = w2.shape[1]  # == 2

    # Exact 2-class softmax -> sigmoid fold.
    fold = jnp.array([[1.0, -1.0], [-1.0, 1.0]], dtype=jnp.float32)
    w2s = w2.astype(jnp.float32) @ fold                       # (50, 2)
    b2s = (b2.astype(jnp.float32) @ fold).reshape(n_cls, 1)   # (2, 1) column (transposed epilogue)

    w1_bf = w1.astype(jnp.bfloat16)                           # tiny one-off cast (7.8 KB)
    b1_f = b1.astype(jnp.float32).reshape(1, hid)

    # Batch tile: single tile for small B (no padding); otherwise a large
    # streaming tile.  tile_b=8192 -> ~8 MiB input double-buffer + ~128 KiB
    # output double-buffer: fits every generation's scoped-VMEM budget.
    if B <= tile_b:
        tb = _round_up(B, 8)           # f32 sublane multiple; single grid step
    else:
        tb = tile_b                    # multiple of 128 lanes for the (2, tb) output
    b_pad = _round_up(B, tb)
    if b_pad != B:
        x = jnp.pad(x, ((0, b_pad - B), (0, 0)))  # only hit when B % tb != 0

    grid = (b_pad // tb,)

    cost = pl.CostEstimate(
        flops=2 * b_pad * (f_in * hid + hid * n_cls),
        transcendentals=b_pad * (hid + n_cls),
        bytes_accessed=b_pad * f_in * 4 + b_pad * n_cls * 4
        + w1_bf.size * 2 + (b1_f.size + w2s.size + b2s.size) * 4,
    )

    out_t = pl.pallas_call(
        _net_kernel,
        out_shape=jax.ShapeDtypeStruct((n_cls, b_pad), jnp.float32),
        grid=grid,
        in_specs=[
            pl.BlockSpec((tb, f_in), lambda i: (i, 0)),      # x: streams per batch tile
            pl.BlockSpec((f_in, hid), lambda i: (0, 0)),     # W1 (bf16), VMEM-resident
            pl.BlockSpec((1, hid), lambda i: (0, 0)),        # b1
            pl.BlockSpec((hid, n_cls), lambda i: (0, 0)),    # W2' (softmax-folded)
            pl.BlockSpec((n_cls, 1), lambda i: (0, 0)),      # b2' (column)
        ],
        out_specs=pl.BlockSpec((n_cls, tb), lambda i: (0, i)),  # lane-dense (2, tb) block
        compiler_params=pltpu.CompilerParams(
            dimension_semantics=("parallel",),               # batch tiles are independent
            vmem_limit_bytes=32 * 1024 * 1024,
        ),
        cost_estimate=cost,
    )(x, w1_bf, b1_f, w2s, b2s)

    # (2, B) -> (B, 2): tiny layout flip (8 bytes/row) outside the kernel.
    return out_t[:, :B].T


def init_params(key):
    """Deterministic synthetic parameters matching the PyTorch module shapes.

    PyTorch nn.Linear stores weight as (out, in); we store the transpose
    (in, out) so the kernel can do x @ W directly.
    """
    k1, k2, k3, k4 = jax.random.split(key, 4)
    w1 = jax.random.normal(k1, (78, 50), dtype=jnp.float32) * 0.1   # fc1
    b1 = jax.random.normal(k2, (1, 50), dtype=jnp.float32) * 0.1
    w2 = jax.random.normal(k3, (50, 2), dtype=jnp.float32) * 0.1    # fc2
    b2 = jax.random.normal(k4, (1, 2), dtype=jnp.float32) * 0.1
    # fc3 / fc4 are defined in the PyTorch __init__ but unused in forward.
    return w1, b1, w2, b2


if __name__ == "__main__":
    key = jax.random.PRNGKey(0)
    k_x, k_p = jax.random.split(key)

    B = 8
    x = jax.random.normal(k_x, (B, 78), dtype=jnp.float32)
    w1, b1, w2, b2 = init_params(k_p)

    out = jax.block_until_ready(net_forward(x, w1, b1, w2, b2))

    # Sanity checks vs. a plain-JAX f32 reference (kernel uses bf16 for the
    # first matmul, so compare with a loosened tolerance).
    ref_h = jax.nn.sigmoid(x @ w1 + b1)
    ref = jax.nn.softmax(ref_h @ w2 + b2, axis=1)
    assert out.shape == (B, 2)
    assert jnp.allclose(jnp.sum(out, axis=1), 1.0, atol=1e-4)
    assert jnp.allclose(out, ref, atol=2e-2)

    print("KERNEL_OK")
</pallas_src>

<mosaic_0001>
module attributes {stable_mosaic.version = 11 : i64} {
  func.func @_net_kernel(%arg0: i32, %arg1: memref<8x78xf32, #tpu.memory_space<vmem>>, %arg2: memref<78x50xbf16, #tpu.memory_space<vmem>>, %arg3: memref<1x50xf32, #tpu.memory_space<vmem>>, %arg4: memref<50x2xf32, #tpu.memory_space<vmem>>, %arg5: memref<2x1xf32, #tpu.memory_space<vmem>>, %arg6: memref<2x8xf32, #tpu.memory_space<vmem>>) attributes {dimension_semantics = [#tpu.dimension_semantics<parallel>], iteration_bounds = array<i64: 1>, scalar_prefetch = 0 : i64, scratch_operands = 0 : i64, tpu.core_type = #tpu.core_type<tc>, window_params = [{transform_indices = @transform_0, window_bounds = array<i64: 8, 78>}, {pipeline_mode = #tpu.pipeline_mode<synchronous>, transform_indices = @transform_1, window_bounds = array<i64: 78, 50>}, {pipeline_mode = #tpu.pipeline_mode<synchronous>, transform_indices = @transform_2, window_bounds = array<i64: 1, 50>}, {pipeline_mode = #tpu.pipeline_mode<synchronous>, transform_indices = @transform_3, window_bounds = array<i64: 50, 2>}, {pipeline_mode = #tpu.pipeline_mode<synchronous>, transform_indices = @transform_4, window_bounds = array<i64: 2, 1>}, {transform_indices = @transform_5, window_bounds = array<i64: 2, 8>}]} {
    %c0 = arith.constant 0 : index
    %c0_0 = arith.constant 0 : index
    %0 = vector.load %arg1[%c0, %c0_0] : memref<8x78xf32, #tpu.memory_space<vmem>>, vector<8x78xf32>
    %1 = arith.truncf %0 : vector<8x78xf32> to vector<8x78xbf16>
    %c0_1 = arith.constant 0 : index
    %c0_2 = arith.constant 0 : index
    %2 = vector.load %arg2[%c0_1, %c0_2] : memref<78x50xbf16, #tpu.memory_space<vmem>>, vector<78x50xbf16>
    %cst = arith.constant dense<0.000000e+00> : vector<8x50xf32>
    %3 = tpu.matmul %1, %2, %cst {dimension_numbers = #tpu.dot_dimension_numbers<[1], [0], [0], [1], [0, 0, 1, 1], [], []>} : vector<8x78xbf16>, vector<78x50xbf16>, vector<8x50xf32> -> vector<8x50xf32>
    %c0_3 = arith.constant 0 : index
    %c0_4 = arith.constant 0 : index
    %4 = vector.load %arg3[%c0_3, %c0_4] : memref<1x50xf32, #tpu.memory_space<vmem>>, vector<1x50xf32>
    %5 = vector.broadcast %4 : vector<1x50xf32> to vector<8x50xf32>
    %6 = arith.addf %3, %5 : vector<8x50xf32>
    %7 = arith.negf %6 : vector<8x50xf32>
    %8 = math.exp %7 : vector<8x50xf32>
    %cst_5 = arith.constant 1.000000e+00 : f32
    %9 = vector.broadcast %cst_5 : f32 to vector<8x50xf32>
    %10 = arith.addf %9, %8 : vector<8x50xf32>
    %11 = arith.divf %9, %10 : vector<8x50xf32>
    %c0_6 = arith.constant 0 : index
    %c0_7 = arith.constant 0 : index
    %12 = vector.load %arg4[%c0_6, %c0_7] : memref<50x2xf32, #tpu.memory_space<vmem>>, vector<50x2xf32>
    %cst_8 = arith.constant dense<0.000000e+00> : vector<8x2xf32>
    %13 = tpu.matmul %11, %12, %cst_8 {dimension_numbers = #tpu.dot_dimension_numbers<[1], [0], [0], [1], [0, 0, 1, 1], [], []>} : vector<8x50xf32>, vector<50x2xf32>, vector<8x2xf32> -> vector<8x2xf32>
    %14 = tpu.transpose %13, [1, 0] : vector<8x2xf32> -> vector<2x8xf32>
    %c0_9 = arith.constant 0 : index
    %c0_10 = arith.constant 0 : index
    %15 = vector.load %arg5[%c0_9, %c0_10] : memref<2x1xf32, #tpu.memory_space<vmem>>, vector<2x1xf32>
    %16 = vector.broadcast %15 : vector<2x1xf32> to vector<2x8xf32>
    %17 = arith.addf %14, %16 : vector<2x8xf32>
    %18 = arith.negf %17 : vector<2x8xf32>
    %19 = math.exp %18 : vector<2x8xf32>
    %cst_11 = arith.constant 1.000000e+00 : f32
    %20 = vector.broadcast %cst_11 : f32 to vector<2x8xf32>
    %21 = arith.addf %20, %19 : vector<2x8xf32>
    %22 = arith.divf %20, %21 : vector<2x8xf32>
    %c0_12 = arith.constant 0 : index
    %c0_13 = arith.constant 0 : index
    %23 = vector.load %arg6[%c0_12, %c0_13] : memref<2x8xf32, #tpu.memory_space<vmem>>, vector<2x8xf32>
    tpu.vector_store %arg6[%c0_12, %c0_13], %22 {strides = array<i32>} : memref<2x8xf32, #tpu.memory_space<vmem>>, vector<2x8xf32>,
    return
  }
  func.func @transform_0(%arg0: i32) -> (i32, i32) {
    %c0_i32 = arith.constant 0 : i32
    %c0_i32_0 = arith.constant 0 : i32
    return %arg0, %c0_i32 : i32, i32
  }
  func.func @transform_1(%arg0: i32) -> (i32, i32) {
    %c0_i32 = arith.constant 0 : i32
    %c0_i32_0 = arith.constant 0 : i32
    %c0_i32_1 = arith.constant 0 : i32
    return %c0_i32, %c0_i32_0 : i32, i32
  }
  func.func @transform_2(%arg0: i32) -> (i32, i32) {
    %c0_i32 = arith.constant 0 : i32
    %c0_i32_0 = arith.constant 0 : i32
    %c0_i32_1 = arith.constant 0 : i32
    return %c0_i32, %c0_i32_0 : i32, i32
  }
  func.func @transform_3(%arg0: i32) -> (i32, i32) {
    %c0_i32 = arith.constant 0 : i32
    %c0_i32_0 = arith.constant 0 : i32
    %c0_i32_1 = arith.constant 0 : i32
    return %c0_i32, %c0_i32_0 : i32, i32
  }
  func.func @transform_4(%arg0: i32) -> (i32, i32) {
    %c0_i32 = arith.constant 0 : i32
    %c0_i32_0 = arith.constant 0 : i32
    %c0_i32_1 = arith.constant 0 : i32
    return %c0_i32, %c0_i32_0 : i32, i32
  }
  func.func @transform_5(%arg0: i32) -> (i32, i32) {
    %c0_i32 = arith.constant 0 : i32
    %c0_i32_0 = arith.constant 0 : i32
    return %c0_i32, %arg0 : i32, i32
  }
}

</mosaic_0001>

<llo_original>
// kernel: net_forward.1
$region0: #{net_forward.1}
  #allocation0 [shape = 'u32[]', space=smem, size = 0x4, offset = 0x4, fixed_abs, tag = 'smem constant byte address 0x4 - core index']
  #allocation1 [shape = 'u32[144,128]{1,0:T(1,128)}', space=vmem, size = 0x12000, scoped, tag = 'internal scratch']
  %s0 = inlined_call_operand.vmem [shape: f32[8,78], index: 0, kind: input, shape index: {}]
  %s1 = inlined_call_operand.vmem [shape: bf16[78,50], index: 1, kind: input, shape index: {}]
  %s2 = inlined_call_operand.vmem [shape: f32[1,50], index: 2, kind: input, shape index: {}]
  %s3 = inlined_call_operand.vmem [shape: f32[50,2], index: 3, kind: input, shape index: {}]
  %s4 = inlined_call_operand.vmem [shape: f32[2,1], index: 4, kind: input, shape index: {}]
  %s5 = inlined_call_operand.hbm [shape: f32[2,8], index: 5, kind: output, shape index: {}]
  %s6 = sld [smem:[#allocation0]]
  $region30: #{net_forward.1} parent=0
    _
  %s8 = ssub.s32 1, %s6
  %s9 = scalar_select 0, %s8, %s6
  $region1: #{net_forward.1} parent=0
    #allocation2 [shape = 'u8[1024]{0}', space=vmem, size = 0x400, scoped, tag = 'output window, operand 0, single buffered']
    #allocation3 [shape = 's32[1]{0}', space=sflag, size = 0x4, scoped, tag = 'scoped memory for net_forward.1']
    %10 = vsyncpa [#allocation3], 0
    // Predicated region
    $region2: #{net_forward.1} parent=1 // pred_check
      _
    $region3: #{net_forward.1} parent=1 // pred_check_branch
      %12 = sbr.rel (0) target = $region5
    $region4: #{net_forward.1} parent=1 // pred_region
      _
    $region5: #{net_forward.1} parent=1 // pred_fallthru
      _
    // Predicated region
    $region6: #{net_forward.1} parent=1 // pred_check
      _
    $region7: #{net_forward.1} parent=1 // pred_check_branch
      %14 = sbr.rel (0) target = $region9
    $region8: #{net_forward.1} parent=1 // pred_region
      _
    $region9: #{net_forward.1} parent=1 // pred_fallthru
      _
    // Predicated region
    $region10: #{net_forward.1} parent=1 // pred_check
      _
    $region11: #{net_forward.1} parent=1 // pred_check_branch
      %16 = sbr.rel (0) target = $region13
    $region12: #{net_forward.1} parent=1 // pred_region
      _
    $region13: #{net_forward.1} parent=1 // pred_fallthru
      _
    // Predicated region
    $region14: #{net_forward.1} parent=1 // pred_check
      _
    $region15: #{net_forward.1} parent=1 // pred_check_branch
      %18 = sbr.rel (0) target = $region17
    $region16: #{net_forward.1} parent=1 // pred_region
      _
    $region17: #{net_forward.1} parent=1 // pred_fallthru
      _
    // Predicated region
    $region18: #{net_forward.1} parent=1 // pred_check
      _
    $region19: #{net_forward.1} parent=1 // pred_check_branch
      %20 = sbr.rel (0) target = $region21
    $region20: #{net_forward.1} parent=1 // pred_region
      _
    $region21: #{net_forward.1} parent=1 // pred_fallthru
      _
    %v22 = vld [vmem:[%s0] sm:$0xff]
    %v23 = vpack.c.bf16 %v22, %v22
    %v24 = vld [vmem:[%s1] sm:$0xf]
    %v25 = vld [vmem:[%s1 + $0x4] sm:$0xf]
    %v26 = vld [vmem:[%s1 + $0x8] sm:$0xf]
    %v27 = vld [vmem:[%s1 + $0xc] sm:$0xf]
    %v28 = vld [vmem:[%s1 + $0x10] sm:$0xf]
    %v29 = vld [vmem:[%s1 + $0x14] sm:$0xf]
    %v30 = vld [vmem:[%s1 + $0x18] sm:$0xf]
    %v31 = vld [vmem:[%s1 + $0x1c] sm:$0xf]
    %v32 = vld [vmem:[%s1 + $0x20] sm:$0xf]
    %v33 = vld [vmem:[%s1 + $0x24] sm:$0x7]
    %v34 = vld [vmem:[%s2] sm:$0x1]
    %v36 = vlaneseq
    %v37 = vshrl.u32 %v36, 7
    %v38 = vsub.s32 0, %v37
    %v39 = vrot.slane %v34, %v38
    %v51 = vunpack.c.l.b16 %v24
    %v52 = vunpack.c.l.b16 %v25
    %v53 = vunpack.c.l.b16 %v26
    %v54 = vunpack.c.l.b16 %v27
    %v55 = vunpack.c.l.b16 %v28
    %v56 = vunpack.c.l.b16 %v29
    %v57 = vunpack.c.l.b16 %v30
    %v58 = vunpack.c.l.b16 %v31
    %v59 = vunpack.c.l.b16 %v32
    %v60 = vunpack.c.l.b16 %v33
    %v61 = vpack.c.b16 %v52, %v51
    %v62 = vpack.c.b16 %v54, %v53
    %v63 = vpack.c.b16 %v56, %v55
    %v64 = vpack.c.b16 %v58, %v57
    %v65 = vpack.c.b16 %v60, %v59
    %vm70 = vcmask 637952
    %v72 = vsel %vm70, %v23, 0
    %vm74 = vcmask 1046528
    %v76 = vsel %vm74, %v65, 0
    %78 = vmatprep.subr.bf16.mxu0 0
    %79 = vmatpush1.bf16.msra.mxu0 0
    %80 = vmatprep.subr.bf16.mxu0 0
    %81 = vmatpush1.bf16.msra.mxu0 0
    %82 = vmatprep.subr.bf16.mxu0 0
    %83 = vmatpush1.bf16.msra.mxu0 0
    %84 = vmatprep.subr.bf16.mxu0 0
    %85 = vmatpush1.bf16.msra.mxu0 %v76
    %86 = vmatprep.subr.bf16.mxu0 0
    %87 = vmatpush1.bf16.msra.mxu0 %v64
    %88 = vmatprep.subr.bf16.mxu0 0
    %89 = vmatpush1.bf16.msra.mxu0 %v63
    %90 = vmatprep.subr.bf16.mxu0 0
    %91 = vmatpush1.bf16.msra.mxu0 %v62
    %92 = vmatprep.subr.bf16.mxu0 0
    %93 = vmatpush1.bf16.msra.mxu0 %v61
    %94 = vmatprep.subr.bf16.mxu0 0
    %95 = vmatpush2.bf16.msra.mxu0 0
    %96 = vmatprep.subr.bf16.mxu0 0
    %97 = vmatpush2.bf16.msra.mxu0 0
    %98 = vmatprep.subr.bf16.mxu0 0
    %99 = vmatpush2.bf16.msra.mxu0 0
    %100 = vmatprep.subr.bf16.mxu0 0
    %101 = vmatpush2.bf16.msra.mxu0 0
    %102 = vmatprep.subr.bf16.mxu0 0
    %103 = vmatpush2.bf16.msra.mxu0 0
    %104 = vmatprep.subr.bf16.mxu0 0
    %105 = vmatpush2.bf16.msra.mxu0 0
    %106 = vmatprep.subr.bf16.mxu0 0
    %107 = vmatpush2.bf16.msra.mxu0 0
    %108 = vmatprep.subr.bf16.mxu0 0
    %109 = vmatpush2.bf16.msra.mxu0 0
    %110 = vmatprep.mubr.bf16.mxu0 0
    %111 = vmatmul.mubr.bf16.gmra.mxu0 %v72
    %v112 = vpop.f32.mrf.mxu0
    %v113 = vadd.f32 %v39, %v112
    %v114 = vpop.f32.mrf.mxu0
    %v115 = vpop.f32.mrf.mxu0
    %v116 = vpop.f32.mrf.mxu0
    %117 = vdwg.mxu0
    %v118 = vxor.u32 %v113, 2147483648
    %v119 = vmul.f32 %v118, 1.442695
    %v120 = vpow.pop %v119
    %v121 = vadd.f32 %v120, 1.0
    %v122 = vrcp.pop %v121
    %v123 = vmul.f32 1.0, %v122
    %v124 = vld [vmem:[%s3] sm:$0xff]
    %v125 = vld [vmem:[%s3 + $0x8] sm:$0xff]
    %v126 = vld [vmem:[%s3 + $0x10] sm:$0xff]
    %v127 = vld [vmem:[%s3 + $0x18] sm:$0xff]
    %v128 = vld [vmem:[%s3 + $0x20] sm:$0xff]
    %v129 = vld [vmem:[%s3 + $0x28] sm:$0xff]
    %v130 = vld [vmem:[%s3 + $0x30] sm:$0x3]
    %vm131 = vcmask 408576
    %v133 = vsel %vm131, %v123, 0
    %vm135 = vcmask 1041408
    %v137 = vsel %vm135, %v130, 0
    %139 = vmatprep.subr.mxu0 0.0
    %140 = vmatpush1.msra.mxu0 0.0
    %141 = vmatprep.subr.mxu0 0.0
    %142 = vmatpush1.msra.mxu0 0.0
    %143 = vmatprep.subr.mxu0 0.0
    %144 = vmatpush1.msra.mxu0 0.0
    %145 = vmatprep.subr.mxu0 0.0
    %146 = vmatpush1.msra.mxu0 0.0
    %147 = vmatprep.subr.mxu0 0.0
    %148 = vmatpush1.msra.mxu0 0.0
    %149 = vmatprep.subr.mxu0 0.0
    %150 = vmatpush1.msra.mxu0 0.0
    %151 = vmatprep.subr.mxu0 0.0
    %152 = vmatpush1.msra.mxu0 0.0
    %153 = vmatprep.subr.mxu0 0.0
    %154 = vmatpush1.msra.mxu0 0.0
    %155 = vmatprep.subr.mxu0 0.0
    %156 = vmatpush1.msra.mxu0 0.0
    %157 = vmatprep.subr.mxu0 0.0
    %158 = vmatpush1.msra.mxu0 %v137
    %159 = vmatprep.subr.mxu0 0.0
    %160 = vmatpush1.msra.mxu0 %v129
    %161 = vmatprep.subr.mxu0 0.0
    %162 = vmatpush1.msra.mxu0 %v128
    %163 = vmatprep.subr.mxu0 0.0
    %164 = vmatpush1.msra.mxu0 %v127
    %165 = vmatprep.subr.mxu0 0.0
    %166 = vmatpush1.msra.mxu0 %v126
    %167 = vmatprep.subr.mxu0 0.0
    %168 = vmatpush1.msra.mxu0 %v125
    %169 = vmatprep.subr.mxu0 0.0
    %170 = vmatpush1.msra.mxu0 %v124
    %171 = vmatprep.subr.mxu0 0.0
    %172 = vmatpush2.msra.mxu0 0.0
    %173 = vmatprep.subr.mxu0 0.0
    %174 = vmatpush2.msra.mxu0 0.0
    %175 = vmatprep.subr.mxu0 0.0
    %176 = vmatpush2.msra.mxu0 0.0
    %177 = vmatprep.subr.mxu0 0.0
    %178 = vmatpush2.msra.mxu0 0.0
    %179 = vmatprep.subr.mxu0 0.0
    %180 = vmatpush2.msra.mxu0 0.0
    %181 = vmatprep.subr.mxu0 0.0
    %182 = vmatpush2.msra.mxu0 0.0
    %183 = vmatprep.subr.mxu0 0.0
    %184 = vmatpush2.msra.mxu0 0.0
    %185 = vmatprep.subr.mxu0 0.0
    %186 = vmatpush2.msra.mxu0 0.0
    %187 = vmatprep.subr.mxu0 0.0
    %188 = vmatpush2.msra.mxu0 0.0
    %189 = vmatprep.subr.mxu0 0.0
    %190 = vmatpush2.msra.mxu0 0.0
    %191 = vmatprep.subr.mxu0 0.0
    %192 = vmatpush2.msra.mxu0 0.0
    %193 = vmatprep.subr.mxu0 0.0
    %194 = vmatpush2.msra.mxu0 0.0
    %195 = vmatprep.subr.mxu0 0.0
    %196 = vmatpush2.msra.mxu0 0.0
    %197 = vmatprep.subr.mxu0 0.0
    %198 = vmatpush2.msra.mxu0 0.0
    %199 = vmatprep.subr.mxu0 0.0
    %200 = vmatpush2.msra.mxu0 0.0
    %201 = vmatprep.subr.mxu0 0.0
    %202 = vmatpush2.msra.mxu0 0.0
    %203 = vmatprep.mubr.f32.mxu0 0.0
    %204 = vmatmul.mubr.f32.gmra.mxu0 %v133
    %v205 = vpop.f32.mrf.mxu0
    %v206 = vadd.f32 0.0, %v205
    %v207 = vpop.f32.mrf.mxu0
    %208 = vdwg.mxu0
    %209 = vxpose.xlu0.b32.start [1/16] %v206, 128
    %210 = vxpose.xlu0.b32.cont [2/16] 0.0, 128
    %211 = vxpose.xlu0.b32.cont [3/16] 0.0, 128
    %212 = vxpose.xlu0.b32.cont [4/16] 0.0, 128
    %213 = vxpose.xlu0.b32.cont [5/16] 0.0, 128
    %214 = vxpose.xlu0.b32.cont [6/16] 0.0, 128
    %215 = vxpose.xlu0.b32.cont [7/16] 0.0, 128
    %216 = vxpose.xlu0.b32.cont [8/16] 0.0, 128
    %217 = vxpose.xlu0.b32.cont [9/16] 0.0, 128
    %218 = vxpose.xlu0.b32.cont [10/16] 0.0, 128
    %219 = vxpose.xlu0.b32.cont [11/16] 0.0, 128
    %220 = vxpose.xlu0.b32.cont [12/16] 0.0, 128
    %221 = vxpose.xlu0.b32.cont [13/16] 0.0, 128
    %222 = vxpose.xlu0.b32.cont [14/16] 0.0, 128
    %223 = vxpose.xlu0.b32.cont [15/16] 0.0, 128
    %224 = vxpose.xlu0.b32.end [16/16] 0.0, 128
    %v225 = vpop.trf.xlu0
    %v226 = vpop.trf.xlu0
    %v227 = vpop.trf.xlu0
    %v228 = vpop.trf.xlu0
    %v229 = vpop.trf.xlu0
    %v230 = vpop.trf.xlu0
    %v231 = vpop.trf.xlu0
    %v232 = vpop.trf.xlu0
    %v233 = vpop.trf.xlu0
    %v234 = vpop.trf.xlu0
    %v235 = vpop.trf.xlu0
    %v236 = vpop.trf.xlu0
    %v237 = vpop.trf.xlu0
    %v238 = vpop.trf.xlu0
    %v239 = vpop.trf.xlu0
    %v240 = vpop.trf.xlu0
    %v241 = vld [vmem:[%s4] sm:$0x3]
    %243 = vset.pattern.permute.xlu0 0
    %244 = vperm.xlu0 %243, %v241
    %v245 = vpop.permute.xlu0 %244
    %v247 = vadd.f32 %v225, %v245
    %v248 = vxor.u32 %v247, 2147483648
    %v249 = vmul.f32 %v248, 1.442695
    %v250 = vpow.pop %v249
    %v251 = vadd.f32 %v250, 1.0
    %v252 = vrcp.pop %v251
    %v253 = vmul.f32 1.0, %v252
    %vm254 = vcmask 58368
    %255 = vst.msk [vmem:[#allocation2] sm:$0x3] %vm254, %v253
    // Predicated region
    $region22: #{net_forward.1} parent=1 // pred_check
      _
    $region23: #{net_forward.1} parent=1 // pred_check_branch
      %257 = sbr.rel (0) target = $region25
    $region24: #{net_forward.1} parent=1 // pred_region
      %s259 = ssub.s32 32, 32
      %260 = vsyncadd [#allocation3], %s259
      %s262 = sshll.u32 [#allocation2], 4
      %s263 = int_to_ptr.vmem [resolvable:$true] %s262
      %265 = dma.vmem_to_hbm [thread:$0]  %s263, 32, %s5, [#allocation3]
    $region25: #{net_forward.1} parent=1 // pred_fallthru
      _
    // Predicated region
    $region26: #{net_forward.1} parent=1 // pred_check
      _
    $region27: #{net_forward.1} parent=1 // pred_check_branch
      %267 = sbr.rel (0) target = $region29
    $region28: #{net_forward.1} parent=1 // pred_region
      %268 = dma.done [#allocation3], 32
    $region29: #{net_forward.1} parent=1 // pred_fallthru
      _
    %269 = vsyncpa [#allocation3], 1

</llo_original>
